<compile_context>
chip_gen: v6e
topology: v6e:2x2x1
jax: 0.10.0
libtpu: 0.0.40
codegen_flags: <defaults>
</compile_context>

<pallas_src>
import jax
import jax.numpy as jnp
from jax.experimental import pallas as pl
from jax.experimental.pallas import tpu as pltpu


def _round_up(x, m):
    return (x + m - 1) // m * m


# ----------------------------------------------------------------------------
# Pallas kernel: fused  (split) Linear+ReLU -> Linear+ReLU -> Linear
# ----------------------------------------------------------------------------
def _ncf_mlp_kernel(ue_ref, ie_ref,
                    w1u_ref, w1i_ref, b1_ref,
                    w2_ref, b2_ref,
                    w3_ref, b3_ref,
                    out_ref):
    # layer 1: h1 = relu(ue @ w1_user + ie @ w1_item + b1)   (concat-free)
    h1 = jnp.dot(ue_ref[...], w1u_ref[...], preferred_element_type=jnp.float32)
    h1 = h1 + jnp.dot(ie_ref[...], w1i_ref[...], preferred_element_type=jnp.float32)
    h1 = jnp.maximum(h1 + b1_ref[...], 0.0)                           # (TB, 128)

    # layer 2: h2 = relu(h1 @ w2 + b2)
    h2 = jnp.dot(h1, w2_ref[...], preferred_element_type=jnp.float32) + b2_ref[...]
    h2 = jnp.maximum(h2, 0.0)                                         # (TB, 128)

    # output layer (K=50, N=1): VPU multiply + lane reduce, skip the MXU
    out_ref[...] = jnp.sum(h2 * w3_ref[...], axis=-1, keepdims=True) + b3_ref[...]


# ----------------------------------------------------------------------------
# Wrapper: weight split/pad + batch-tiled pallas_call
# ----------------------------------------------------------------------------
def ncf_mlp_pallas(user_emb, item_emb, params, *, tile_b=2048):
    """Fused NCF MLP on TPU. Returns (B, 1) float32 predictions."""
    B, F = user_emb.shape
    H1 = params["w1"].shape[1]
    H2 = params["w2"].shape[1]
    H1P = _round_up(H1, 128)
    H2P = _round_up(H2, 128)

    # --- split w1 (removes the in-kernel concat) and zero-pad hidden widths.
    # Padded h1 columns are ReLU(0)=0 and the padded w2 rows / w3 lanes are 0,
    # so results are bit-for-bit consistent with the unpadded math.
    w1 = params["w1"]
    w1u = jnp.pad(w1[:F, :], ((0, 0), (0, H1P - H1)))                 # (F, H1P)
    w1i = jnp.pad(w1[F:, :], ((0, 0), (0, H1P - H1)))                 # (F, H1P)
    b1 = jnp.pad(params["b1"], ((0, 0), (0, H1P - H1)))               # (1, H1P)
    w2 = jnp.pad(params["w2"], ((0, H1P - H1), (0, H2P - H2)))        # (H1P, H2P)
    b2 = jnp.pad(params["b2"], ((0, 0), (0, H2P - H2)))               # (1, H2P)
    w3 = jnp.pad(params["w3"].T, ((0, 0), (0, H2P - H2)))             # (1, H2P)
    b3 = params["b3"]                                                 # (1, 1)

    # --- batch tiling (pad batch to a multiple of the tile) ---
    tile_b = max(8, min(tile_b, _round_up(B, 8)))
    B_pad = _round_up(B, tile_b)
    if B_pad != B:
        user_emb = jnp.pad(user_emb, ((0, B_pad - B), (0, 0)))
        item_emb = jnp.pad(item_emb, ((0, B_pad - B), (0, 0)))
    n_tiles = B_pad // tile_b

    batch_map = lambda i: (i, 0)   # streamed per-tile
    const_map = lambda i: (0, 0)   # VMEM-resident across the grid

    flops = 2 * B_pad * (2 * F * H1P + H1P * H2P + H2P)
    bytes_accessed = 4 * (B_pad * (2 * F + 1)
                          + 2 * F * H1P + H1P * H2P + 2 * H1P + 2 * H2P + 1)

    out = pl.pallas_call(
        _ncf_mlp_kernel,
        out_shape=jax.ShapeDtypeStruct((B_pad, 1), jnp.float32),
        grid_spec=pltpu.PrefetchScalarGridSpec(
            num_scalar_prefetch=0,
            grid=(n_tiles,),
            in_specs=[
                pl.BlockSpec((tile_b, F), batch_map),     # user embedding tile
                pl.BlockSpec((tile_b, F), batch_map),     # item embedding tile
                pl.BlockSpec((F, H1P), const_map),        # w1 (user half)
                pl.BlockSpec((F, H1P), const_map),        # w1 (item half)
                pl.BlockSpec((1, H1P), const_map),        # b1
                pl.BlockSpec((H1P, H2P), const_map),      # w2
                pl.BlockSpec((1, H2P), const_map),        # b2
                pl.BlockSpec((1, H2P), const_map),        # w3 (row vector)
                pl.BlockSpec((1, 1), const_map),          # b3
            ],
            out_specs=pl.BlockSpec((tile_b, 1), batch_map),
        ),
        compiler_params=pltpu.CompilerParams(
            dimension_semantics=("parallel",),
            vmem_limit_bytes=32 * 1024 * 1024,
        ),
        cost_estimate=pl.CostEstimate(
            flops=flops, transcendentals=0, bytes_accessed=bytes_accessed),
    )(user_emb, item_emb, w1u, w1i, b1, w2, b2, w3, b3)

    return out[:B]


# ----------------------------------------------------------------------------
# Parameter init (matches the PyTorch module's _init_weights semantics)
# ----------------------------------------------------------------------------
def init_ncf_params(key, n_users, n_items, n_factors=50, hidden_dims=(100, 50)):
    k_ue, k_ie, k_w1, k_w2, k_w3 = jax.random.split(key, 5)

    def xavier_uniform(k, fan_in, fan_out):
        bound = jnp.sqrt(6.0 / (fan_in + fan_out))
        return jax.random.uniform(k, (fan_in, fan_out), jnp.float32, -bound, bound)

    h1, h2 = hidden_dims
    return {
        "user_embedding": 0.01 * jax.random.normal(k_ue, (n_users, n_factors), jnp.float32),
        "item_embedding": 0.01 * jax.random.normal(k_ie, (n_items, n_factors), jnp.float32),
        "w1": xavier_uniform(k_w1, 2 * n_factors, h1),
        "b1": jnp.zeros((1, h1), jnp.float32),
        "w2": xavier_uniform(k_w2, h1, h2),
        "b2": jnp.zeros((1, h2), jnp.float32),
        "w3": xavier_uniform(k_w3, h2, 1),
        "b3": jnp.zeros((1, 1), jnp.float32),
    }


# ----------------------------------------------------------------------------
# Full forward (embedding gather = JAX glue, MLP = Pallas kernel)
# ----------------------------------------------------------------------------
@jax.jit
def ncf_forward(params, user_indices, item_indices):
    # TODO(synk): fuse the embedding gather into the kernel (scalar-prefetch
    # indices + HBM-resident tables). Skipped here: at F=50 each gathered row
    # is only 200 B, so a per-row in-kernel DMA gather is descriptor-overhead
    # bound; XLA's native gather handles this row size better.
    user_emb = jnp.take(params["user_embedding"], user_indices, axis=0)   # (B, F)
    item_emb = jnp.take(params["item_embedding"], item_indices, axis=0)   # (B, F)
    pred = ncf_mlp_pallas(user_emb, item_emb, params)                     # (B, 1)
    return jnp.squeeze(pred)                                              # (B,)


# pure-JAX reference for correctness check
def ncf_forward_ref(params, user_indices, item_indices):
    ue = jnp.take(params["user_embedding"], user_indices, axis=0)
    ie = jnp.take(params["item_embedding"], item_indices, axis=0)
    x = jnp.concatenate([ue, ie], axis=1)
    h1 = jnp.maximum(x @ params["w1"] + params["b1"], 0.0)
    h2 = jnp.maximum(h1 @ params["w2"] + params["b2"], 0.0)
    out = h2 @ params["w3"] + params["b3"]
    return jnp.squeeze(out)


if __name__ == "__main__":
    key = jax.random.PRNGKey(0)

    n_users, n_items = 32, 64
    n_factors = 50
    hidden_dims = (100, 50)
    batch = 8

    k_params, k_u, k_i = jax.random.split(key, 3)
    params = init_ncf_params(k_params, n_users, n_items, n_factors, hidden_dims)

    user_indices = jax.random.randint(k_u, (batch,), 0, n_users, dtype=jnp.int32)
    item_indices = jax.random.randint(k_i, (batch,), 0, n_items, dtype=jnp.int32)

    pred = ncf_forward(params, user_indices, item_indices)
    pred = jax.block_until_ready(pred)

    ref = ncf_forward_ref(params, user_indices, item_indices)
    assert pred.shape == (batch,), pred.shape
    assert jnp.allclose(pred, ref, atol=1e-5, rtol=1e-5), (pred, ref)

    print("KERNEL_OK")
</pallas_src>

<mosaic_0001>
module attributes {stable_mosaic.version = 11 : i64} {
  func.func @_ncf_mlp_kernel(%arg0: i32, %arg1: memref<8x50xf32, #tpu.memory_space<vmem>>, %arg2: memref<8x50xf32, #tpu.memory_space<vmem>>, %arg3: memref<50x128xf32, #tpu.memory_space<vmem>>, %arg4: memref<50x128xf32, #tpu.memory_space<vmem>>, %arg5: memref<1x128xf32, #tpu.memory_space<vmem>>, %arg6: memref<128x128xf32, #tpu.memory_space<vmem>>, %arg7: memref<1x128xf32, #tpu.memory_space<vmem>>, %arg8: memref<1x128xf32, #tpu.memory_space<vmem>>, %arg9: memref<1x1xf32, #tpu.memory_space<vmem>>, %arg10: memref<8x1xf32, #tpu.memory_space<vmem>>) attributes {dimension_semantics = [#tpu.dimension_semantics<parallel>], iteration_bounds = array<i64: 1>, scalar_prefetch = 0 : i64, scratch_operands = 0 : i64, tpu.core_type = #tpu.core_type<tc>, window_params = [{transform_indices = @transform_0, window_bounds = array<i64: 8, 50>}, {transform_indices = @transform_1, window_bounds = array<i64: 8, 50>}, {pipeline_mode = #tpu.pipeline_mode<synchronous>, transform_indices = @transform_2, window_bounds = array<i64: 50, 128>}, {pipeline_mode = #tpu.pipeline_mode<synchronous>, transform_indices = @transform_3, window_bounds = array<i64: 50, 128>}, {pipeline_mode = #tpu.pipeline_mode<synchronous>, transform_indices = @transform_4, window_bounds = array<i64: 1, 128>}, {pipeline_mode = #tpu.pipeline_mode<synchronous>, transform_indices = @transform_5, window_bounds = array<i64: 128, 128>}, {pipeline_mode = #tpu.pipeline_mode<synchronous>, transform_indices = @transform_6, window_bounds = array<i64: 1, 128>}, {pipeline_mode = #tpu.pipeline_mode<synchronous>, transform_indices = @transform_7, window_bounds = array<i64: 1, 128>}, {pipeline_mode = #tpu.pipeline_mode<synchronous>, transform_indices = @transform_8, window_bounds = array<i64: 1, 1>}, {transform_indices = @transform_9, window_bounds = array<i64: 8, 1>}]} {
    %c0 = arith.constant 0 : index
    %c0_0 = arith.constant 0 : index
    %0 = vector.load %arg1[%c0, %c0_0] : memref<8x50xf32, #tpu.memory_space<vmem>>, vector<8x50xf32>
    %c0_1 = arith.constant 0 : index
    %c0_2 = arith.constant 0 : index
    %1 = vector.load %arg3[%c0_1, %c0_2] : memref<50x128xf32, #tpu.memory_space<vmem>>, vector<50x128xf32>
    %cst = arith.constant dense<0.000000e+00> : vector<8x128xf32>
    %2 = tpu.matmul %0, %1, %cst {dimension_numbers = #tpu.dot_dimension_numbers<[1], [0], [0], [1], [0, 0, 1, 1], [], []>} : vector<8x50xf32>, vector<50x128xf32>, vector<8x128xf32> -> vector<8x128xf32>
    %c0_3 = arith.constant 0 : index
    %c0_4 = arith.constant 0 : index
    %3 = vector.load %arg2[%c0_3, %c0_4] : memref<8x50xf32, #tpu.memory_space<vmem>>, vector<8x50xf32>
    %c0_5 = arith.constant 0 : index
    %c0_6 = arith.constant 0 : index
    %4 = vector.load %arg4[%c0_5, %c0_6] : memref<50x128xf32, #tpu.memory_space<vmem>>, vector<50x128xf32>
    %cst_7 = arith.constant dense<0.000000e+00> : vector<8x128xf32>
    %5 = tpu.matmul %3, %4, %cst_7 {dimension_numbers = #tpu.dot_dimension_numbers<[1], [0], [0], [1], [0, 0, 1, 1], [], []>} : vector<8x50xf32>, vector<50x128xf32>, vector<8x128xf32> -> vector<8x128xf32>
    %6 = arith.addf %2, %5 : vector<8x128xf32>
    %c0_8 = arith.constant 0 : index
    %c0_9 = arith.constant 0 : index
    %7 = vector.load %arg5[%c0_8, %c0_9] : memref<1x128xf32, #tpu.memory_space<vmem>>, vector<1x128xf32>
    %8 = vector.broadcast %7 : vector<1x128xf32> to vector<8x128xf32>
    %9 = arith.addf %6, %8 : vector<8x128xf32>
    %cst_10 = arith.constant 0.000000e+00 : f32
    %10 = vector.broadcast %cst_10 : f32 to vector<8x128xf32>
    %11 = arith.maximumf %9, %10 : vector<8x128xf32>
    %c0_11 = arith.constant 0 : index
    %c0_12 = arith.constant 0 : index
    %12 = vector.load %arg6[%c0_11, %c0_12] : memref<128x128xf32, #tpu.memory_space<vmem>>, vector<128x128xf32>
    %cst_13 = arith.constant dense<0.000000e+00> : vector<8x128xf32>
    %13 = tpu.matmul %11, %12, %cst_13 {dimension_numbers = #tpu.dot_dimension_numbers<[1], [0], [0], [1], [0, 0, 1, 1], [], []>} : vector<8x128xf32>, vector<128x128xf32>, vector<8x128xf32> -> vector<8x128xf32>
    %c0_14 = arith.constant 0 : index
    %c0_15 = arith.constant 0 : index
    %14 = vector.load %arg7[%c0_14, %c0_15] : memref<1x128xf32, #tpu.memory_space<vmem>>, vector<1x128xf32>
    %15 = vector.broadcast %14 : vector<1x128xf32> to vector<8x128xf32>
    %16 = arith.addf %13, %15 : vector<8x128xf32>
    %cst_16 = arith.constant 0.000000e+00 : f32
    %17 = vector.broadcast %cst_16 : f32 to vector<8x128xf32>
    %18 = arith.maximumf %16, %17 : vector<8x128xf32>
    %c0_17 = arith.constant 0 : index
    %c0_18 = arith.constant 0 : index
    %19 = vector.load %arg8[%c0_17, %c0_18] : memref<1x128xf32, #tpu.memory_space<vmem>>, vector<1x128xf32>
    %20 = vector.broadcast %19 : vector<1x128xf32> to vector<8x128xf32>
    %21 = arith.mulf %18, %20 : vector<8x128xf32>
    %cst_19 = arith.constant dense<0.000000e+00> : vector<8xf32>
    %22 = vector.multi_reduction <add>, %21, %cst_19 [1] : vector<8x128xf32> to vector<8xf32>
    %23 = vector.shape_cast %22 : vector<8xf32> to vector<8x1xf32>
    %c0_20 = arith.constant 0 : index
    %c0_21 = arith.constant 0 : index
    %24 = vector.load %arg9[%c0_20, %c0_21] : memref<1x1xf32, #tpu.memory_space<vmem>>, vector<1x1xf32>
    %25 = vector.broadcast %24 : vector<1x1xf32> to vector<8x1xf32>
    %26 = arith.addf %23, %25 : vector<8x1xf32>
    %c0_22 = arith.constant 0 : index
    %c0_23 = arith.constant 0 : index
    %27 = vector.load %arg10[%c0_22, %c0_23] : memref<8x1xf32, #tpu.memory_space<vmem>>, vector<8x1xf32>
    tpu.vector_store %arg10[%c0_22, %c0_23], %26 {strides = array<i32>} : memref<8x1xf32, #tpu.memory_space<vmem>>, vector<8x1xf32>,
    return
  }
  func.func @transform_0(%arg0: i32) -> (i32, i32) {
    %c0_i32 = arith.constant 0 : i32
    %c0_i32_0 = arith.constant 0 : i32
    return %arg0, %c0_i32 : i32, i32
  }
  func.func @transform_1(%arg0: i32) -> (i32, i32) {
    %c0_i32 = arith.constant 0 : i32
    %c0_i32_0 = arith.constant 0 : i32
    return %arg0, %c0_i32 : i32, i32
  }
  func.func @transform_2(%arg0: i32) -> (i32, i32) {
    %c0_i32 = arith.constant 0 : i32
    %c0_i32_0 = arith.constant 0 : i32
    %c0_i32_1 = arith.constant 0 : i32
    return %c0_i32, %c0_i32_0 : i32, i32
  }
  func.func @transform_3(%arg0: i32) -> (i32, i32) {
    %c0_i32 = arith.constant 0 : i32
    %c0_i32_0 = arith.constant 0 : i32
    %c0_i32_1 = arith.constant 0 : i32
    return %c0_i32, %c0_i32_0 : i32, i32
  }
  func.func @transform_4(%arg0: i32) -> (i32, i32) {
    %c0_i32 = arith.constant 0 : i32
    %c0_i32_0 = arith.constant 0 : i32
    %c0_i32_1 = arith.constant 0 : i32
    return %c0_i32, %c0_i32_0 : i32, i32
  }
  func.func @transform_5(%arg0: i32) -> (i32, i32) {
    %c0_i32 = arith.constant 0 : i32
    %c0_i32_0 = arith.constant 0 : i32
    %c0_i32_1 = arith.constant 0 : i32
    return %c0_i32, %c0_i32_0 : i32, i32
  }
  func.func @transform_6(%arg0: i32) -> (i32, i32) {
    %c0_i32 = arith.constant 0 : i32
    %c0_i32_0 = arith.constant 0 : i32
    %c0_i32_1 = arith.constant 0 : i32
    return %c0_i32, %c0_i32_0 : i32, i32
  }
  func.func @transform_7(%arg0: i32) -> (i32, i32) {
    %c0_i32 = arith.constant 0 : i32
    %c0_i32_0 = arith.constant 0 : i32
    %c0_i32_1 = arith.constant 0 : i32
    return %c0_i32, %c0_i32_0 : i32, i32
  }
  func.func @transform_8(%arg0: i32) -> (i32, i32) {
    %c0_i32 = arith.constant 0 : i32
    %c0_i32_0 = arith.constant 0 : i32
    %c0_i32_1 = arith.constant 0 : i32
    return %c0_i32, %c0_i32_0 : i32, i32
  }
  func.func @transform_9(%arg0: i32) -> (i32, i32) {
    %c0_i32 = arith.constant 0 : i32
    %c0_i32_0 = arith.constant 0 : i32
    return %arg0, %c0_i32 : i32, i32
  }
}

</mosaic_0001>

<llo_original>
// kernel: ncf_forward.1
$region0: #{ncf_forward.1}
  #allocation0 [shape = 'u32[]', space=smem, size = 0x4, offset = 0x4, fixed_abs, tag = 'smem constant byte address 0x4 - core index']
  #allocation1 [shape = 'u32[144,128]{1,0:T(1,128)}', space=vmem, size = 0x12000, scoped, tag = 'internal scratch']
  #allocation2 [shape = 'f32[1,1]{1,0:T(1,128)S(1)}', space=vmem, size = 0x200, scoped, tag = 'scoped memory for ncf_forward.1']
  %s0 = inlined_call_operand.vmem [shape: f32[8,50], index: 0, kind: input, shape index: {}]
  %s1 = inlined_call_operand.vmem [shape: f32[8,50], index: 1, kind: input, shape index: {}]
  %s2 = inlined_call_operand.vmem [shape: f32[50,128], index: 2, kind: input, shape index: {}]
  %s3 = inlined_call_operand.vmem [shape: f32[50,128], index: 3, kind: input, shape index: {}]
  %s4 = inlined_call_operand.vmem [shape: f32[1,128], index: 4, kind: input, shape index: {}]
  %s5 = inlined_call_operand.vmem [shape: f32[128,128], index: 5, kind: input, shape index: {}]
  %s6 = inlined_call_operand.vmem [shape: f32[1,128], index: 6, kind: input, shape index: {}]
  %s7 = inlined_call_operand.vmem [shape: f32[1,128], index: 7, kind: input, shape index: {}]
  %s8 = inlined_call_operand.<no memory space> [shape: f32[1,1], index: 8, kind: input, shape index: {}]
  %s9 = inlined_call_operand.vmem [shape: f32[8,1], index: 9, kind: output, shape index: {}]
  %s10 = sld [smem:[#allocation0]]
  $region46: #{ncf_forward.1} parent=0
    _
  %s12 = ssub.s32 1, %s10
  %s13 = scalar_select 0, %s12, %s10
  %v14 = vstv %s8
  %15 = vst [vmem:[#allocation2] sm:$0x1] %v14
  // Predicated region
  $region2: #{ncf_forward.1} parent=0 // pred_check
    _
  $region3: #{ncf_forward.1} parent=0 // pred_check_branch
    %17 = sbr.rel (0) target = $region5
  $region4: #{ncf_forward.1} parent=0 // pred_region
    _
  $region5: #{ncf_forward.1} parent=0 // pred_fallthru
    _
  // Predicated region
  $region6: #{ncf_forward.1} parent=0 // pred_check
    _
  $region7: #{ncf_forward.1} parent=0 // pred_check_branch
    %19 = sbr.rel (0) target = $region9
  $region8: #{ncf_forward.1} parent=0 // pred_region
    _
  $region9: #{ncf_forward.1} parent=0 // pred_fallthru
    _
  // Predicated region
  $region10: #{ncf_forward.1} parent=0 // pred_check
    _
  $region11: #{ncf_forward.1} parent=0 // pred_check_branch
    %21 = sbr.rel (0) target = $region13
  $region12: #{ncf_forward.1} parent=0 // pred_region
    _
  $region13: #{ncf_forward.1} parent=0 // pred_fallthru
    _
  // Predicated region
  $region14: #{ncf_forward.1} parent=0 // pred_check
    _
  $region15: #{ncf_forward.1} parent=0 // pred_check_branch
    %23 = sbr.rel (0) target = $region17
  $region16: #{ncf_forward.1} parent=0 // pred_region
    _
  $region17: #{ncf_forward.1} parent=0 // pred_fallthru
    _
  // Predicated region
  $region18: #{ncf_forward.1} parent=0 // pred_check
    _
  $region19: #{ncf_forward.1} parent=0 // pred_check_branch
    %25 = sbr.rel (0) target = $region21
  $region20: #{ncf_forward.1} parent=0 // pred_region
    _
  $region21: #{ncf_forward.1} parent=0 // pred_fallthru
    _
  // Predicated region
  $region22: #{ncf_forward.1} parent=0 // pred_check
    _
  $region23: #{ncf_forward.1} parent=0 // pred_check_branch
    %27 = sbr.rel (0) target = $region25
  $region24: #{ncf_forward.1} parent=0 // pred_region
    _
  $region25: #{ncf_forward.1} parent=0 // pred_fallthru
    _
  // Predicated region
  $region26: #{ncf_forward.1} parent=0 // pred_check
    _
  $region27: #{ncf_forward.1} parent=0 // pred_check_branch
    %29 = sbr.rel (0) target = $region29
  $region28: #{ncf_forward.1} parent=0 // pred_region
    _
  $region29: #{ncf_forward.1} parent=0 // pred_fallthru
    _
  // Predicated region
  $region30: #{ncf_forward.1} parent=0 // pred_check
    _
  $region31: #{ncf_forward.1} parent=0 // pred_check_branch
    %31 = sbr.rel (0) target = $region33
  $region32: #{ncf_forward.1} parent=0 // pred_region
    _
  $region33: #{ncf_forward.1} parent=0 // pred_fallthru
    _
  // Predicated region
  $region34: #{ncf_forward.1} parent=0 // pred_check
    _
  $region35: #{ncf_forward.1} parent=0 // pred_check_branch
    %33 = sbr.rel (0) target = $region37
  $region36: #{ncf_forward.1} parent=0 // pred_region
    _
  $region37: #{ncf_forward.1} parent=0 // pred_fallthru
    _
  %v34 = vld [vmem:[%s0] sm:$0xff]
  %v35 = vld [vmem:[%s2] sm:$0xff]
  %v36 = vld [vmem:[%s2 + $0x8] sm:$0xff]
  %v37 = vld [vmem:[%s2 + $0x10] sm:$0xff]
  %v38 = vld [vmem:[%s2 + $0x18] sm:$0xff]
  %v39 = vld [vmem:[%s2 + $0x20] sm:$0xff]
  %v40 = vld [vmem:[%s2 + $0x28] sm:$0xff]
  %v41 = vld [vmem:[%s2 + $0x30] sm:$0x3]
  %v42 = vld [vmem:[%s1] sm:$0xff]
  %v43 = vld [vmem:[%s3] sm:$0xff]
  %v44 = vld [vmem:[%s3 + $0x8] sm:$0xff]
  %v45 = vld [vmem:[%s3 + $0x10] sm:$0xff]
  %v46 = vld [vmem:[%s3 + $0x18] sm:$0xff]
  %v47 = vld [vmem:[%s3 + $0x20] sm:$0xff]
  %v48 = vld [vmem:[%s3 + $0x28] sm:$0xff]
  %v49 = vld [vmem:[%s3 + $0x30] sm:$0x3]
  %vm50 = vcmask 408576
  %v52 = vsel %vm50, %v42, 0
  %vm54 = vcmask 1041408
  %v56 = vsel %vm54, %v49, 0
  %58 = vmatprep.subr.mxu0 0.0
  %59 = vmatpush1.msra.mxu0 0.0
  %60 = vmatprep.subr.mxu0 0.0
  %61 = vmatpush1.msra.mxu0 0.0
  %62 = vmatprep.subr.mxu0 0.0
  %63 = vmatpush1.msra.mxu0 0.0
  %64 = vmatprep.subr.mxu0 0.0
  %65 = vmatpush1.msra.mxu0 0.0
  %66 = vmatprep.subr.mxu0 0.0
  %67 = vmatpush1.msra.mxu0 0.0
  %68 = vmatprep.subr.mxu0 0.0
  %69 = vmatpush1.msra.mxu0 0.0
  %70 = vmatprep.subr.mxu0 0.0
  %71 = vmatpush1.msra.mxu0 0.0
  %72 = vmatprep.subr.mxu0 0.0
  %73 = vmatpush1.msra.mxu0 0.0
  %74 = vmatprep.subr.mxu0 0.0
  %75 = vmatpush1.msra.mxu0 0.0
  %76 = vmatprep.subr.mxu0 0.0
  %77 = vmatpush1.msra.mxu0 %v56
  %78 = vmatprep.subr.mxu0 0.0
  %79 = vmatpush1.msra.mxu0 %v48
  %80 = vmatprep.subr.mxu0 0.0
  %81 = vmatpush1.msra.mxu0 %v47
  %82 = vmatprep.subr.mxu0 0.0
  %83 = vmatpush1.msra.mxu0 %v46
  %84 = vmatprep.subr.mxu0 0.0
  %85 = vmatpush1.msra.mxu0 %v45
  %86 = vmatprep.subr.mxu0 0.0
  %87 = vmatpush1.msra.mxu0 %v44
  %88 = vmatprep.subr.mxu0 0.0
  %89 = vmatpush1.msra.mxu0 %v43
  %90 = vmatprep.subr.mxu0 0.0
  %91 = vmatpush2.msra.mxu0 0.0
  %92 = vmatprep.subr.mxu0 0.0
  %93 = vmatpush2.msra.mxu0 0.0
  %94 = vmatprep.subr.mxu0 0.0
  %95 = vmatpush2.msra.mxu0 0.0
  %96 = vmatprep.subr.mxu0 0.0
  %97 = vmatpush2.msra.mxu0 0.0
  %98 = vmatprep.subr.mxu0 0.0
  %99 = vmatpush2.msra.mxu0 0.0
  %100 = vmatprep.subr.mxu0 0.0
  %101 = vmatpush2.msra.mxu0 0.0
  %102 = vmatprep.subr.mxu0 0.0
  %103 = vmatpush2.msra.mxu0 0.0
  %104 = vmatprep.subr.mxu0 0.0
  %105 = vmatpush2.msra.mxu0 0.0
  %106 = vmatprep.subr.mxu0 0.0
  %107 = vmatpush2.msra.mxu0 0.0
  %108 = vmatprep.subr.mxu0 0.0
  %109 = vmatpush2.msra.mxu0 0.0
  %110 = vmatprep.subr.mxu0 0.0
  %111 = vmatpush2.msra.mxu0 0.0
  %112 = vmatprep.subr.mxu0 0.0
  %113 = vmatpush2.msra.mxu0 0.0
  %114 = vmatprep.subr.mxu0 0.0
  %115 = vmatpush2.msra.mxu0 0.0
  %116 = vmatprep.subr.mxu0 0.0
  %117 = vmatpush2.msra.mxu0 0.0
  %118 = vmatprep.subr.mxu0 0.0
  %119 = vmatpush2.msra.mxu0 0.0
  %120 = vmatprep.subr.mxu0 0.0
  %121 = vmatpush2.msra.mxu0 0.0
  %122 = vmatprep.mubr.f32.mxu0 0.0
  %123 = vmatmul.mubr.f32.gmra.mxu0 %v52
  %v124 = vpop.f32.mrf.mxu0
  %v125 = vadd.f32 0.0, %v124
  %v126 = vpop.f32.mrf.mxu0
  %127 = vdwg.mxu0
  %v129 = vsel %vm50, %v34, 0
  %v132 = vsel %vm54, %v41, 0
  %134 = vmatprep.subr.mxu0 0.0
  %135 = vmatpush1.msra.mxu0 0.0
  %136 = vmatprep.subr.mxu0 0.0
  %137 = vmatpush1.msra.mxu0 0.0
  %138 = vmatprep.subr.mxu0 0.0
  %139 = vmatpush1.msra.mxu0 0.0
  %140 = vmatprep.subr.mxu0 0.0
  %141 = vmatpush1.msra.mxu0 0.0
  %142 = vmatprep.subr.mxu0 0.0
  %143 = vmatpush1.msra.mxu0 0.0
  %144 = vmatprep.subr.mxu0 0.0
  %145 = vmatpush1.msra.mxu0 0.0
  %146 = vmatprep.subr.mxu0 0.0
  %147 = vmatpush1.msra.mxu0 0.0
  %148 = vmatprep.subr.mxu0 0.0
  %149 = vmatpush1.msra.mxu0 0.0
  %150 = vmatprep.subr.mxu0 0.0
  %151 = vmatpush1.msra.mxu0 0.0
  %152 = vmatprep.subr.mxu0 0.0
  %153 = vmatpush1.msra.mxu0 %v132
  %154 = vmatprep.subr.mxu0 0.0
  %155 = vmatpush1.msra.mxu0 %v40
  %156 = vmatprep.subr.mxu0 0.0
  %157 = vmatpush1.msra.mxu0 %v39
  %158 = vmatprep.subr.mxu0 0.0
  %159 = vmatpush1.msra.mxu0 %v38
  %160 = vmatprep.subr.mxu0 0.0
  %161 = vmatpush1.msra.mxu0 %v37
  %162 = vmatprep.subr.mxu0 0.0
  %163 = vmatpush1.msra.mxu0 %v36
  %164 = vmatprep.subr.mxu0 0.0
  %165 = vmatpush1.msra.mxu0 %v35
  %166 = vmatprep.subr.mxu0 0.0
  %167 = vmatpush2.msra.mxu0 0.0
  %168 = vmatprep.subr.mxu0 0.0
  %169 = vmatpush2.msra.mxu0 0.0
  %170 = vmatprep.subr.mxu0 0.0
  %171 = vmatpush2.msra.mxu0 0.0
  %172 = vmatprep.subr.mxu0 0.0
  %173 = vmatpush2.msra.mxu0 0.0
  %174 = vmatprep.subr.mxu0 0.0
  %175 = vmatpush2.msra.mxu0 0.0
  %176 = vmatprep.subr.mxu0 0.0
  %177 = vmatpush2.msra.mxu0 0.0
  %178 = vmatprep.subr.mxu0 0.0
  %179 = vmatpush2.msra.mxu0 0.0
  %180 = vmatprep.subr.mxu0 0.0
  %181 = vmatpush2.msra.mxu0 0.0
  %182 = vmatprep.subr.mxu0 0.0
  %183 = vmatpush2.msra.mxu0 0.0
  %184 = vmatprep.subr.mxu0 0.0
  %185 = vmatpush2.msra.mxu0 0.0
  %186 = vmatprep.subr.mxu0 0.0
  %187 = vmatpush2.msra.mxu0 0.0
  %188 = vmatprep.subr.mxu0 0.0
  %189 = vmatpush2.msra.mxu0 0.0
  %190 = vmatprep.subr.mxu0 0.0
  %191 = vmatpush2.msra.mxu0 0.0
  %192 = vmatprep.subr.mxu0 0.0
  %193 = vmatpush2.msra.mxu0 0.0
  %194 = vmatprep.subr.mxu0 0.0
  %195 = vmatpush2.msra.mxu0 0.0
  %196 = vmatprep.subr.mxu0 0.0
  %197 = vmatpush2.msra.mxu0 0.0
  %198 = vmatprep.mubr.f32.mxu0 0.0
  %199 = vmatmul.mubr.f32.gmra.mxu0 %v129
  %v200 = vpop.f32.mrf.mxu0
  %v201 = vadd.f32 %v125, %v200
  %v202 = vpop.f32.mrf.mxu0
  %203 = vdwg.mxu0
  %v204 = vld [vmem:[%s4] sm:$0x1]
  %v206 = vlaneseq
  %v207 = vshrl.u32 %v206, 7
  %v208 = vsub.s32 0, %v207
  %v209 = vrot.slane %v204, %v208
  %v211 = vadd.f32 %v201, %v209
  %v212 = vmax.f32 %v211, 0.0
  %v213 = vld [vmem:[%s5] sm:$0xff]
  %v214 = vld [vmem:[%s5 + $0x8] sm:$0xff]
  %v215 = vld [vmem:[%s5 + $0x10] sm:$0xff]
  %v216 = vld [vmem:[%s5 + $0x18] sm:$0xff]
  %v217 = vld [vmem:[%s5 + $0x20] sm:$0xff]
  %v218 = vld [vmem:[%s5 + $0x28] sm:$0xff]
  %v219 = vld [vmem:[%s5 + $0x30] sm:$0xff]
  %v220 = vld [vmem:[%s5 + $0x38] sm:$0xff]
  %v221 = vld [vmem:[%s5 + $0x40] sm:$0xff]
  %v222 = vld [vmem:[%s5 + $0x48] sm:$0xff]
  %v223 = vld [vmem:[%s5 + $0x50] sm:$0xff]
  %v224 = vld [vmem:[%s5 + $0x58] sm:$0xff]
  %v225 = vld [vmem:[%s5 + $0x60] sm:$0xff]
  %v226 = vld [vmem:[%s5 + $0x68] sm:$0xff]
  %v227 = vld [vmem:[%s5 + $0x70] sm:$0xff]
  %v228 = vld [vmem:[%s5 + $0x78] sm:$0xff]
  %v229 = vld [vmem:[%s6] sm:$0x1]
  %v231 = vlaneseq
  %v232 = vshrl.u32 %v231, 7
  %v233 = vsub.s32 0, %v232
  %v234 = vrot.slane %v229, %v233
  %236 = vmatprep.subr.mxu0 0.0
  %237 = vmatpush1.msra.mxu0 %v228
  %238 = vmatprep.subr.mxu0 0.0
  %239 = vmatpush1.msra.mxu0 %v227
  %240 = vmatprep.subr.mxu0 0.0
  %241 = vmatpush1.msra.mxu0 %v226
  %242 = vmatprep.subr.mxu0 0.0
  %243 = vmatpush1.msra.mxu0 %v225
  %244 = vmatprep.subr.mxu0 0.0
  %245 = vmatpush1.msra.mxu0 %v224
  %246 = vmatprep.subr.mxu0 0.0
  %247 = vmatpush1.msra.mxu0 %v223
  %248 = vmatprep.subr.mxu0 0.0
  %249 = vmatpush1.msra.mxu0 %v222
  %250 = vmatprep.subr.mxu0 0.0
  %251 = vmatpush1.msra.mxu0 %v221
  %252 = vmatprep.subr.mxu0 0.0
  %253 = vmatpush1.msra.mxu0 %v220
  %254 = vmatprep.subr.mxu0 0.0
  %255 = vmatpush1.msra.mxu0 %v219
  %256 = vmatprep.subr.mxu0 0.0
  %257 = vmatpush1.msra.mxu0 %v218
  %258 = vmatprep.subr.mxu0 0.0
  %259 = vmatpush1.msra.mxu0 %v217
  %260 = vmatprep.subr.mxu0 0.0
  %261 = vmatpush1.msra.mxu0 %v216
  %262 = vmatprep.subr.mxu0 0.0
  %263 = vmatpush1.msra.mxu0 %v215
  %264 = vmatprep.subr.mxu0 0.0
  %265 = vmatpush1.msra.mxu0 %v214
  %266 = vmatprep.subr.mxu0 0.0
  %267 = vmatpush1.msra.mxu0 %v213
  %268 = vmatprep.subr.mxu0 0.0
  %269 = vmatpush2.msra.mxu0 0.0
  %270 = vmatprep.subr.mxu0 0.0
  %271 = vmatpush2.msra.mxu0 0.0
  %272 = vmatprep.subr.mxu0 0.0
  %273 = vmatpush2.msra.mxu0 0.0
  %274 = vmatprep.subr.mxu0 0.0
  %275 = vmatpush2.msra.mxu0 0.0
  %276 = vmatprep.subr.mxu0 0.0
  %277 = vmatpush2.msra.mxu0 0.0
  %278 = vmatprep.subr.mxu0 0.0
  %279 = vmatpush2.msra.mxu0 0.0
  %280 = vmatprep.subr.mxu0 0.0
  %281 = vmatpush2.msra.mxu0 0.0
  %282 = vmatprep.subr.mxu0 0.0
  %283 = vmatpush2.msra.mxu0 0.0
  %284 = vmatprep.subr.mxu0 0.0
  %285 = vmatpush2.msra.mxu0 0.0
  %286 = vmatprep.subr.mxu0 0.0
  %287 = vmatpush2.msra.mxu0 0.0
  %288 = vmatprep.subr.mxu0 0.0
  %289 = vmatpush2.msra.mxu0 0.0
  %290 = vmatprep.subr.mxu0 0.0
  %291 = vmatpush2.msra.mxu0 0.0
  %292 = vmatprep.subr.mxu0 0.0
  %293 = vmatpush2.msra.mxu0 0.0
  %294 = vmatprep.subr.mxu0 0.0
  %295 = vmatpush2.msra.mxu0 0.0
  %296 = vmatprep.subr.mxu0 0.0
  %297 = vmatpush2.msra.mxu0 0.0
  %298 = vmatprep.subr.mxu0 0.0
  %299 = vmatpush2.msra.mxu0 0.0
  %300 = vmatprep.mubr.f32.mxu0 0.0
  %301 = vmatmul.mubr.f32.gmra.mxu0 %v212
  %v302 = vpop.f32.mrf.mxu0
  %v303 = vadd.f32 %v234, %v302
  %v304 = vpop.f32.mrf.mxu0
  %305 = vdwg.mxu0
  %v306 = vmax.f32 %v303, 0.0
  %v307 = vld [vmem:[%s7] sm:$0x1]
  %v309 = vlaneseq
  %v310 = vshrl.u32 %v309, 7
  %v311 = vsub.s32 0, %v310
  %v312 = vrot.slane %v307, %v311
  %v314 = vmul.f32 %v306, %v312
  %315 = vadd.xlane.f32.xlu0 %v314
  %v316 = vpop.xlane.xlu0 %315
  %v317 = vld [vmem:[#allocation2] sm:$0x1]
  %v319 = vlaneseq
  %v320 = vshrl.u32 %v319, 7
  %v321 = vsub.s32 0, %v320
  %v322 = vrot.slane %v317, %v321
  %v324 = vadd.f32 %v316, %v322
  %vm325 = vcmask 7168
  %326 = vst.msk [vmem:[%s9] sm:$0xff] %vm325, %v324
  // Predicated region
  $region38: #{ncf_forward.1} parent=0 // pred_check
    _
  $region39: #{ncf_forward.1} parent=0 // pred_check_branch
    %328 = sbr.rel (0) target = $region41
  $region40: #{ncf_forward.1} parent=0 // pred_region
    _
  $region41: #{ncf_forward.1} parent=0 // pred_fallthru
    _
  // Predicated region
  $region42: #{ncf_forward.1} parent=0 // pred_check
    _
  $region43: #{ncf_forward.1} parent=0 // pred_check_branch
    %330 = sbr.rel (0) target = $region45
  $region44: #{ncf_forward.1} parent=0 // pred_region
    _
  $region45: #{ncf_forward.1} parent=0 // pred_fallthru
    _

</llo_original>
